<compile_context>
chip_gen: v6e
topology: v6e:2x2x1
jax: 0.10.0
libtpu: 0.0.40
codegen_flags: <defaults>
</compile_context>

<pallas_src>
import math

import jax
import jax.numpy as jnp
from jax.experimental import pallas as pl
from jax.experimental.pallas import tpu as pltpu

_LANE = 128
# ~2 MiB blocks: measured tiled-add data shows >=85% of HBM roofline at >=1 MiB tiles.
# Double-buffered in + out (+ resident PE slice) is ~8.5 MiB total, which stays well
# under v5e's 16 MiB scoped-VMEM default, v6e/v7x's 32 MiB default, and v7x's 64 MiB
# physical VMEM.  Do NOT raise this without also setting vmem_limit_bytes explicitly.
_TARGET_BLOCK_BYTES = 2 * 1024 * 1024


def make_sinusoidal_encoding(d_embed: int, max_len: int = 256) -> jnp.ndarray:
    """Replicates the PyTorch PositionalEncoding buffer: shape [max_len, d_embed], f32."""
    assert d_embed % 2 == 0, "d_embed must be even for the sin/cos interleave"
    position = jnp.arange(0, max_len, dtype=jnp.float32)[:, None]              # [max_len, 1]
    div_term = jnp.exp(
        jnp.arange(0, d_embed, 2, dtype=jnp.float32) * -(math.log(10000.0) / d_embed)
    )                                                                           # [d_embed//2]
    angles = position * div_term                                                # [max_len, d_embed//2]
    enc = jnp.zeros((max_len, d_embed), dtype=jnp.float32)
    enc = enc.at[:, 0::2].set(jnp.sin(angles))
    enc = enc.at[:, 1::2].set(jnp.cos(angles))
    return enc


def prepare_positional_encoding(encoding: jnp.ndarray, seq_len: int, dtype) -> jnp.ndarray:
    """Pre-slice / pre-cast / flatten the PE table ONCE, outside the per-call hot path.

    Returns a lane-dense (1, seq_len * d_embed) table ready for the kernel; callers
    should cache this per (seq_len, dtype) rather than rebuilding it every forward.
    """
    max_len, d_embed = encoding.shape
    if seq_len > max_len:
        raise ValueError(f"seq_len={seq_len} exceeds positional-encoding max_len={max_len}")
    return encoding[:seq_len, :].astype(dtype).reshape(1, seq_len * d_embed)


def _add_pe_kernel(x_ref, pe_ref, o_ref):
    # x_ref: (row_block, col_block); pe_ref: (1, col_block) -> broadcast over rows.
    # Pure VPU elementwise add; the output last dim is a multiple of 128 (or the full
    # flattened extent), so stores are full-width vst, not masked vst.msk.
    o_ref[...] = x_ref[...] + pe_ref[...]


def _sublane_granularity(itemsize: int) -> int:
    # Sub-32-bit dtypes pack along sublanes: native tiles are (8,128) f32,
    # (16,128) bf16, (32,128) int8/fp8.
    return {4: 8, 2: 16, 1: 32}.get(itemsize, 8)


def _choose_blocks(batch: int, n_flat: int, dtype):
    """Pick lane-dense blocks capped at ~_TARGET_BLOCK_BYTES, VMEM-safe on all chips."""
    itemsize = jnp.dtype(dtype).itemsize
    sub = _sublane_granularity(itemsize)

    # Rows: one packed-sublane tile unless the batch is smaller than a tile
    # (full-extent rows are always a legal block shape).  Never full-extent for
    # large, non-multiple-of-sub batches: the ragged row tail is masked by Pallas.
    row_block = batch if batch < sub else sub

    # Columns: as wide as the budget allows (multiple of 128), or full extent if small.
    col_budget = max(_LANE, (_TARGET_BLOCK_BYTES // (itemsize * max(row_block, 1))) // _LANE * _LANE)
    col_block = n_flat if n_flat <= col_budget else col_budget

    # If the column dim is already full-extent and under budget, grow rows (in
    # multiples of the packed tile) up to ~_TARGET_BLOCK_BYTES.
    if col_block == n_flat and batch > row_block:
        rows = (_TARGET_BLOCK_BYTES // (itemsize * col_block)) // sub * sub
        row_block = min(batch, max(row_block, rows))

    return row_block, col_block


@jax.jit
def positional_encoding_forward(x: jnp.ndarray, pe2d: jnp.ndarray) -> jnp.ndarray:
    """x: [B, S, D]; pe2d: [1, S*D] (pre-sliced/cast, see prepare_positional_encoding).

    Returns x + encoding[:S] broadcast over the batch dimension.
    """
    B, S, D = x.shape
    N = S * D
    if pe2d.shape != (1, N):
        raise ValueError(f"pe2d shape {pe2d.shape} does not match (1, {N})")
    if pe2d.dtype != x.dtype:
        raise ValueError(f"pe2d dtype {pe2d.dtype} does not match x dtype {x.dtype}")

    # Lane-dense flattening: (B, S, D) -> (B, S*D) so the kernel's last dim is wide.
    x2d = x.reshape(B, N)

    row_block, col_block = _choose_blocks(B, N, x.dtype)
    # Grid: (column chunks, row/batch chunks).  Batch is the INNER axis and the PE
    # index_map is constant along it, so the PE slice stays resident in VMEM and is
    # only re-DMA'd when the column chunk changes.  Both axes are independent, so
    # both are "parallel" — lets v7x shard the batch axis across its 2 TensorCores
    # even when there is a single column chunk (no effect on v5e/v6e).
    grid = (pl.cdiv(N, col_block), pl.cdiv(B, row_block))

    out2d = pl.pallas_call(
        _add_pe_kernel,
        out_shape=jax.ShapeDtypeStruct((B, N), x.dtype),
        grid_spec=pltpu.PrefetchScalarGridSpec(
            num_scalar_prefetch=0,
            grid=grid,
            in_specs=[
                pl.BlockSpec((row_block, col_block), lambda c, r: (r, c)),
                pl.BlockSpec((1, col_block), lambda c, r: (0, c)),  # const over r -> resident
            ],
            out_specs=pl.BlockSpec((row_block, col_block), lambda c, r: (r, c)),
        ),
        compiler_params=pltpu.CompilerParams(
            dimension_semantics=("parallel", "parallel"),
        ),
        # NOTE: no input_output_aliases here — x is a non-donated jit parameter, so
        # aliasing would force XLA to insert a defensive full copy of x2d (an extra
        # B*S*D read+write of HBM).  Reinstate {0: 0} only if the caller donates x.
    )(x2d, pe2d)

    return out2d.reshape(B, S, D)


if __name__ == "__main__":
    # Small shapes consistent with the module: batch=2, seq=8, d_embed=32.
    B, S, D = 2, 8, 32
    MAX_LEN = 256

    key = jax.random.PRNGKey(0)
    x = jax.random.normal(key, (B, S, D), dtype=jnp.float32)

    encoding = make_sinusoidal_encoding(D, MAX_LEN)
    pe2d = prepare_positional_encoding(encoding, S, x.dtype)  # hoisted out of the hot path

    out = positional_encoding_forward(x, pe2d)
    out = jax.block_until_ready(out)

    # Sanity check against a pure-JAX reference.
    ref = x + encoding[None, :S, :]
    assert out.shape == (B, S, D)
    assert jnp.allclose(out, ref, atol=1e-6), "mismatch vs reference"

    print("KERNEL_OK")
</pallas_src>

<mosaic_0001>
module attributes {stable_mosaic.version = 11 : i64} {
  func.func @_add_pe_kernel(%arg0: i32, %arg1: i32, %arg2: memref<2x256xf32, #tpu.memory_space<vmem>>, %arg3: memref<1x256xf32, #tpu.memory_space<vmem>>, %arg4: memref<2x256xf32, #tpu.memory_space<vmem>>) attributes {dimension_semantics = [#tpu.dimension_semantics<parallel>, #tpu.dimension_semantics<parallel>], iteration_bounds = array<i64: 1, 1>, scalar_prefetch = 0 : i64, scratch_operands = 0 : i64, tpu.core_type = #tpu.core_type<tc>, window_params = [{transform_indices = @transform_0, window_bounds = array<i64: 2, 256>}, {transform_indices = @transform_1, window_bounds = array<i64: 1, 256>}, {transform_indices = @transform_2, window_bounds = array<i64: 2, 256>}]} {
    %c0 = arith.constant 0 : index
    %c0_0 = arith.constant 0 : index
    %0 = vector.load %arg2[%c0, %c0_0] : memref<2x256xf32, #tpu.memory_space<vmem>>, vector<2x256xf32>
    %c0_1 = arith.constant 0 : index
    %c0_2 = arith.constant 0 : index
    %1 = vector.load %arg3[%c0_1, %c0_2] : memref<1x256xf32, #tpu.memory_space<vmem>>, vector<1x256xf32>
    %2 = vector.broadcast %1 : vector<1x256xf32> to vector<2x256xf32>
    %3 = arith.addf %0, %2 : vector<2x256xf32>
    %c0_3 = arith.constant 0 : index
    %c0_4 = arith.constant 0 : index
    %4 = vector.load %arg4[%c0_3, %c0_4] : memref<2x256xf32, #tpu.memory_space<vmem>>, vector<2x256xf32>
    tpu.vector_store %arg4[%c0_3, %c0_4], %3 {strides = array<i32>} : memref<2x256xf32, #tpu.memory_space<vmem>>, vector<2x256xf32>,
    return
  }
  func.func @transform_0(%arg0: i32, %arg1: i32) -> (i32, i32) {
    %c0_i32 = arith.constant 0 : i32
    return %arg1, %arg0 : i32, i32
  }
  func.func @transform_1(%arg0: i32, %arg1: i32) -> (i32, i32) {
    %c0_i32 = arith.constant 0 : i32
    %c0_i32_0 = arith.constant 0 : i32
    return %c0_i32, %arg0 : i32, i32
  }
  func.func @transform_2(%arg0: i32, %arg1: i32) -> (i32, i32) {
    %c0_i32 = arith.constant 0 : i32
    return %arg1, %arg0 : i32, i32
  }
}

</mosaic_0001>

<llo_original>
// kernel: positional_encoding_forward.1
$region0: #{positional_encoding_forward.1}
  #allocation0 [shape = 'u32[]', space=smem, size = 0x4, offset = 0x4, fixed_abs, tag = 'smem constant byte address 0x4 - core index']
  #allocation1 [shape = 'u32[144,128]{1,0:T(1,128)}', space=vmem, size = 0x12000, scoped, tag = 'internal scratch']
  %s0 = inlined_call_operand.vmem [shape: f32[2,256], index: 0, kind: input, shape index: {}]
  %s1 = inlined_call_operand.vmem [shape: f32[1,256], index: 1, kind: input, shape index: {}]
  %s2 = inlined_call_operand.vmem [shape: f32[2,256], index: 2, kind: output, shape index: {}]
  %s3 = sld [smem:[#allocation0]]
  $region18: #{positional_encoding_forward.1} parent=0
    _
  %s5 = ssub.s32 1, %s3
  %s6 = scalar_select 0, %s5, %s3
  // Predicated region
  $region2: #{positional_encoding_forward.1} parent=0 // pred_check
    _
  $region3: #{positional_encoding_forward.1} parent=0 // pred_check_branch
    %8 = sbr.rel (0) target = $region5
  $region4: #{positional_encoding_forward.1} parent=0 // pred_region
    _
  $region5: #{positional_encoding_forward.1} parent=0 // pred_fallthru
    _
  // Predicated region
  $region6: #{positional_encoding_forward.1} parent=0 // pred_check
    _
  $region7: #{positional_encoding_forward.1} parent=0 // pred_check_branch
    %10 = sbr.rel (0) target = $region9
  $region8: #{positional_encoding_forward.1} parent=0 // pred_region
    _
  $region9: #{positional_encoding_forward.1} parent=0 // pred_fallthru
    _
  %v11 = vld [vmem:[%s0] sm:$0xf]
  %v12 = vld [vmem:[%s1] sm:$0x3]
  %v14 = vlaneseq
  %v15 = vshrl.u32 %v14, 7
  %v16 = vsub.s32 0, %v15
  %v17 = vrot.slane %v12, %v16
  %v18 = vlaneseq
  %v19 = vshrl.u32 %v18, 7
  %v20 = vsub.s32 1, %v19
  %v21 = vrot.slane %v12, %v20
  %v22 = vcombine.low %v17, %v21
  %v24 = vunpack.c.l.s4 1983009808
  %v25 = vunpack.c.0.s8 %v24
  %v26 = vlaneseq
  %v27 = vshrl.u32 %v26, 7
  %v28 = vsub.s32 %v25, %v27
  %v29 = vrot.slane %v22, %v28
  %v31 = vadd.f32 %v11, %v29
  %32 = vst [vmem:[%s2] sm:$0xf] %v31
  // Predicated region
  $region10: #{positional_encoding_forward.1} parent=0 // pred_check
    _
  $region11: #{positional_encoding_forward.1} parent=0 // pred_check_branch
    %34 = sbr.rel (0) target = $region13
  $region12: #{positional_encoding_forward.1} parent=0 // pred_region
    _
  $region13: #{positional_encoding_forward.1} parent=0 // pred_fallthru
    _
  // Predicated region
  $region14: #{positional_encoding_forward.1} parent=0 // pred_check
    _
  $region15: #{positional_encoding_forward.1} parent=0 // pred_check_branch
    %36 = sbr.rel (0) target = $region17
  $region16: #{positional_encoding_forward.1} parent=0 // pred_region
    _
  $region17: #{positional_encoding_forward.1} parent=0 // pred_fallthru
    _

</llo_original>
